<compile_context>
chip_gen: v7x
topology: tpu7x:2x2x1
jax: 0.10.0
libtpu: 0.0.40
codegen_flags: <defaults>
</compile_context>

<pallas_src>
import math
import jax
import jax.numpy as jnp
from jax import lax
from jax.experimental import pallas as pl
from jax.experimental.pallas import tpu as pltpu

# ---- model config (matches the PyTorch module at small test size) ----
B = 2                       # batch
N = 8                       # tokens
C = 32                      # dim
H = 4                       # num_heads
HD = C // H                 # head_dim = 8
MLP_HIDDEN = int(C * 4.0)   # 128
EPS = 1e-5
SCALE = HD ** (-0.5)

BN = B * N                  # total token rows
L = H * N                   # stacked rows per grid step (heads along sublanes)
QKV_HD = 3 * HD             # per-head [q|k|v] column group width = 24
W_IN_COLS = 3 * C + C + MLP_HIDDEN    # 96 + 32 + 128 = 256
NEG_INF = -1e30             # plain Python float (host-side mask only)


def _layernorm(x, gamma, beta):
    mean = jnp.mean(x, axis=-1, keepdims=True)
    var = jnp.mean((x - mean) ** 2, axis=-1, keepdims=True)
    return (x - mean) * lax.rsqrt(var + EPS) * gamma + beta


def _erf_approx(z):
    # Abramowitz & Stegun 7.1.26, |err| < 1.5e-7 (far below bf16 matmul noise).
    # Used instead of lax.erf so the kernel only relies on exp/mul/where.
    a = jnp.abs(z)
    t = 1.0 / (1.0 + 0.3275911 * a)
    poly = t * (0.254829592 + t * (-0.284496736 + t * (1.421413741
              + t * (-1.453152027 + t * 1.061405429))))
    e = 1.0 - poly * jnp.exp(-a * a)
    return jnp.where(z >= 0.0, e, -e)


def _gelu_exact(x):
    # nn.GELU default = exact erf formulation
    return 0.5 * x * (1.0 + _erf_approx(x / math.sqrt(2.0)))


def block_kernel(x_ref, w_in_ref, w2_ref, vec_ref, mask_ref, o_ref):
    x = x_ref[...]                                   # (N, C) f32, one batch

    # ---- unpack packed parameters (static slices) ----
    w_in = w_in_ref[...]                             # (C, 256) bf16
    w_attn = w_in[:, 0:3 * C]                        # (C, 3C) per-head grouped
    wproj = w_in[:, 3 * C:4 * C]                     # (C, C)
    wfc1 = w_in[:, 4 * C:4 * C + MLP_HIDDEN]         # (C, MLP_HIDDEN)

    vecs = vec_ref[...]                              # (8, 128) f32
    g1 = vecs[0:1, 0:C]
    b1 = vecs[1:2, 0:C]
    bproj = vecs[2:3, 0:C]
    g2 = vecs[3:4, 0:C]
    b2 = vecs[4:5, 0:C]
    bfc2 = vecs[5:6, 0:C]
    bfc1 = vecs[6:7, :]                              # (1, MLP_HIDDEN)

    # ---- norm1 (f32) ----
    xn = _layernorm(x, g1, b1)                       # (N, C)

    # ---- fused multi-head attention ----
    # Weight columns are pre-grouped per head: [q_h0*scale | k_h0 | v_h0 | q_h1 | ...]
    qkv = jnp.dot(xn.astype(jnp.bfloat16), w_attn,
                  preferred_element_type=jnp.float32)          # (N, 3C) f32

    # Stack heads along sublanes: one contiguous 24-lane slice per head.
    stk = jnp.concatenate(
        [qkv[:, h * QKV_HD:(h + 1) * QKV_HD] for h in range(H)], axis=0)  # (L, 24)
    stk16 = stk.astype(jnp.bfloat16)
    q_stk = stk16[:, 0:HD]                           # scale already folded in
    k_stk = stk16[:, HD:2 * HD]
    v_stk = stk16[:, 2 * HD:3 * HD]

    # One score matmul for all heads + precomputed additive block-diag mask.
    s = lax.dot_general(q_stk, k_stk, (((1,), (1,)), ((), ())),
                        preferred_element_type=jnp.float32)    # (L, L) f32
    s = s + mask_ref[...]
    # Masked entries: exp(-1e30 - rowmax) underflows to exactly 0; every row
    # contains its own valid diagonal block so the denominator is > 0.
    s = s - jnp.max(s, axis=-1, keepdims=True)
    p = jnp.exp(s)
    p = p / jnp.sum(p, axis=-1, keepdims=True)
    o_stk = jnp.dot(p.astype(jnp.bfloat16), v_stk,
                    preferred_element_type=jnp.float32)        # (L, HD) f32

    # Un-stack heads: row block h -> lane block h*HD:(h+1)*HD.
    attn_out = jnp.concatenate(
        [o_stk[h * N:(h + 1) * N, :] for h in range(H)], axis=-1)  # (N, C)

    y = jnp.dot(attn_out.astype(jnp.bfloat16), wproj,
                preferred_element_type=jnp.float32) + bproj

    # drop_path / dropout are Identity at p=0.0
    x1 = x + y                                       # residual 1

    # ---- norm2 + MLP ----
    xn2 = _layernorm(x1, g2, b2)
    hdn = jnp.dot(xn2.astype(jnp.bfloat16), wfc1,
                  preferred_element_type=jnp.float32) + bfc1
    hdn = _gelu_exact(hdn)
    mlp_out = jnp.dot(hdn.astype(jnp.bfloat16), w2_ref[...],
                      preferred_element_type=jnp.float32) + bfc2

    o_ref[...] = x1 + mlp_out                        # residual 2


def pack_params(p):
    """One-time, host-side parameter packing (kept OUT of the per-call jit path)."""
    wq = p["wqkv"].T[:, 0:C]
    wk = p["wqkv"].T[:, C:2 * C]
    wv = p["wqkv"].T[:, 2 * C:3 * C]
    # Per-head grouped qkv columns; attention scale folded into q columns.
    head_blocks = []
    for h in range(H):
        sl = slice(h * HD, (h + 1) * HD)
        head_blocks += [wq[:, sl] * SCALE, wk[:, sl], wv[:, sl]]
    w_attn = jnp.concatenate(head_blocks, axis=1)                       # (C, 3C)
    w_in = jnp.concatenate([w_attn, p["wproj"].T, p["w1"].T],
                           axis=1).astype(jnp.bfloat16)                 # (C, 256)
    w2 = p["w2"].T.astype(jnp.bfloat16)                                 # (MLP_HIDDEN, C)

    vecs = jnp.zeros((8, 128), jnp.float32)
    vecs = vecs.at[0, :C].set(p["g1"])
    vecs = vecs.at[1, :C].set(p["b1"])
    vecs = vecs.at[2, :C].set(p["bproj"])
    vecs = vecs.at[3, :C].set(p["g2"])
    vecs = vecs.at[4, :C].set(p["b2"])
    vecs = vecs.at[5, :C].set(p["bfc2"])
    vecs = vecs.at[6, :MLP_HIDDEN].set(p["bfc1"])

    # Static additive block-diagonal mask: rows/cols in the same (head) group
    # of N keep their score, everything else gets -1e30.
    gid = jnp.arange(L) // N
    mask = jnp.where(gid[:, None] == gid[None, :], 0.0, NEG_INF).astype(jnp.float32)
    return w_in, w2, vecs, mask


@jax.jit
def vit_block_pallas(x, w_in, w2, vecs, mask):
    """x: (B, N, C) f32; remaining args are the pre-packed parameter slabs."""
    x2d = x.reshape(BN, C)
    out2d = pl.pallas_call(
        block_kernel,
        out_shape=jax.ShapeDtypeStruct((BN, C), jnp.float32),
        grid_spec=pltpu.PrefetchScalarGridSpec(
            num_scalar_prefetch=0,
            grid=(B,),
            in_specs=[
                pl.BlockSpec((N, C), lambda b: (b, 0)),               # x (one batch)
                pl.BlockSpec((C, W_IN_COLS), lambda b: (0, 0)),       # qkv|proj|fc1 (bf16)
                pl.BlockSpec((MLP_HIDDEN, C), lambda b: (0, 0)),      # fc2 weight (bf16)
                pl.BlockSpec((8, 128), lambda b: (0, 0)),             # LN params + biases
                pl.BlockSpec((L, L), lambda b: (0, 0)),               # additive attn mask
            ],
            out_specs=pl.BlockSpec((N, C), lambda b: (b, 0)),
        ),
        compiler_params=pltpu.CompilerParams(
            dimension_semantics=("parallel",)),
    )(x2d, w_in, w2, vecs, mask)
    return out2d.reshape(B, N, C)


# ---------- pure-JAX reference (mirrors the PyTorch forward) ----------
def vit_block_ref(x, p):
    def ln(z, g, b):
        m = jnp.mean(z, axis=-1, keepdims=True)
        v = jnp.mean((z - m) ** 2, axis=-1, keepdims=True)
        return (z - m) / jnp.sqrt(v + EPS) * g + b

    xn = ln(x, p["g1"], p["b1"])
    qkv = xn @ p["wqkv"].T                                  # (B, N, 3C)
    qkv = qkv.reshape(B, N, 3, H, HD).transpose(2, 0, 3, 1, 4)
    q, k, v = qkv[0], qkv[1], qkv[2]                        # (B, H, N, HD)
    attn = jax.nn.softmax((q * SCALE) @ jnp.swapaxes(k, -2, -1), axis=-1)
    y = (attn @ v).transpose(0, 2, 1, 3).reshape(B, N, C)
    y = y @ p["wproj"].T + p["bproj"]
    x1 = x + y
    xn2 = ln(x1, p["g2"], p["b2"])
    hdn = xn2 @ p["w1"].T + p["bfc1"]
    hdn = 0.5 * hdn * (1.0 + lax.erf(hdn / math.sqrt(2.0)))
    return x1 + (hdn @ p["w2"].T + p["bfc2"])


def init_params(key):
    ks = jax.random.split(key, 7)
    std = 0.02
    # torch Linear weight shapes: qkv (3C, C) [no bias], proj (C, C),
    # fc1 (MLP_HIDDEN, C), fc2 (C, MLP_HIDDEN)
    return {
        "wqkv": jax.random.normal(ks[0], (3 * C, C), jnp.float32) * std,
        "wproj": jax.random.normal(ks[1], (C, C), jnp.float32) * std,
        "bproj": jax.random.normal(ks[2], (C,), jnp.float32) * std,
        "w1": jax.random.normal(ks[3], (MLP_HIDDEN, C), jnp.float32) * std,
        "bfc1": jax.random.normal(ks[4], (MLP_HIDDEN,), jnp.float32) * std,
        "w2": jax.random.normal(ks[5], (C, MLP_HIDDEN), jnp.float32) * std,
        "bfc2": jax.random.normal(ks[6], (C,), jnp.float32) * std,
        "g1": jnp.ones((C,), jnp.float32), "b1": jnp.zeros((C,), jnp.float32),
        "g2": jnp.ones((C,), jnp.float32), "b2": jnp.zeros((C,), jnp.float32),
    }


if __name__ == "__main__":
    key = jax.random.PRNGKey(0)
    kx, kp = jax.random.split(key)
    x = jax.random.normal(kx, (B, N, C), jnp.float32)
    params = init_params(kp)

    packed = pack_params(params)          # one-time packing, outside the jit path

    out = jax.block_until_ready(vit_block_pallas(x, *packed))
    ref = vit_block_ref(x, params)

    assert out.shape == (B, N, C)
    max_diff = jnp.max(jnp.abs(out - ref))
    # bf16 matmul operands (explicit in the kernel, implicit via default MXU
    # precision in the reference) bound the expected mismatch well below 2e-3.
    assert jnp.allclose(out, ref, atol=2e-3, rtol=2e-3), \
        f"max abs diff {max_diff}"
    print("KERNEL_OK")
</pallas_src>

<mosaic_0001>
module attributes {stable_mosaic.version = 11 : i64} {
  func.func @block_kernel(%arg0: i32, %arg1: memref<8x32xf32, #tpu.memory_space<vmem>>, %arg2: memref<32x256xbf16, #tpu.memory_space<vmem>>, %arg3: memref<128x32xbf16, #tpu.memory_space<vmem>>, %arg4: memref<8x128xf32, #tpu.memory_space<vmem>>, %arg5: memref<32x32xf32, #tpu.memory_space<vmem>>, %arg6: memref<8x32xf32, #tpu.memory_space<vmem>>) attributes {dimension_semantics = [#tpu.dimension_semantics<parallel>], iteration_bounds = array<i64: 2>, scalar_prefetch = 0 : i64, scratch_operands = 0 : i64, tpu.core_type = #tpu.core_type<tc>, window_params = [{transform_indices = @transform_0, window_bounds = array<i64: 8, 32>}, {pipeline_mode = #tpu.pipeline_mode<synchronous>, transform_indices = @transform_1, window_bounds = array<i64: 32, 256>}, {pipeline_mode = #tpu.pipeline_mode<synchronous>, transform_indices = @transform_2, window_bounds = array<i64: 128, 32>}, {pipeline_mode = #tpu.pipeline_mode<synchronous>, transform_indices = @transform_3, window_bounds = array<i64: 8, 128>}, {pipeline_mode = #tpu.pipeline_mode<synchronous>, transform_indices = @transform_4, window_bounds = array<i64: 32, 32>}, {transform_indices = @transform_5, window_bounds = array<i64: 8, 32>}]} {
    %c0 = arith.constant 0 : index
    %c0_0 = arith.constant 0 : index
    %0 = vector.load %arg1[%c0, %c0_0] : memref<8x32xf32, #tpu.memory_space<vmem>>, vector<8x32xf32>
    %c0_1 = arith.constant 0 : index
    %c0_2 = arith.constant 0 : index
    %1 = vector.load %arg2[%c0_1, %c0_2] : memref<32x256xbf16, #tpu.memory_space<vmem>>, vector<32x256xbf16>
    %2 = vector.extract_strided_slice %1 {offsets = [0, 0], sizes = [32, 96], strides = [1, 1]} : vector<32x256xbf16> to vector<32x96xbf16>
    %3 = vector.extract_strided_slice %1 {offsets = [0, 96], sizes = [32, 32], strides = [1, 1]} : vector<32x256xbf16> to vector<32x32xbf16>
    %4 = vector.extract_strided_slice %1 {offsets = [0, 128], sizes = [32, 128], strides = [1, 1]} : vector<32x256xbf16> to vector<32x128xbf16>
    %c0_3 = arith.constant 0 : index
    %c0_4 = arith.constant 0 : index
    %5 = vector.load %arg4[%c0_3, %c0_4] : memref<8x128xf32, #tpu.memory_space<vmem>>, vector<8x128xf32>
    %6 = vector.extract_strided_slice %5 {offsets = [0, 0], sizes = [1, 32], strides = [1, 1]} : vector<8x128xf32> to vector<1x32xf32>
    %7 = vector.extract_strided_slice %5 {offsets = [1, 0], sizes = [1, 32], strides = [1, 1]} : vector<8x128xf32> to vector<1x32xf32>
    %8 = vector.extract_strided_slice %5 {offsets = [2, 0], sizes = [1, 32], strides = [1, 1]} : vector<8x128xf32> to vector<1x32xf32>
    %9 = vector.extract_strided_slice %5 {offsets = [3, 0], sizes = [1, 32], strides = [1, 1]} : vector<8x128xf32> to vector<1x32xf32>
    %10 = vector.extract_strided_slice %5 {offsets = [4, 0], sizes = [1, 32], strides = [1, 1]} : vector<8x128xf32> to vector<1x32xf32>
    %11 = vector.extract_strided_slice %5 {offsets = [5, 0], sizes = [1, 32], strides = [1, 1]} : vector<8x128xf32> to vector<1x32xf32>
    %12 = vector.extract_strided_slice %5 {offsets = [6, 0], sizes = [1, 128], strides = [1, 1]} : vector<8x128xf32> to vector<1x128xf32>
    %cst = arith.constant dense<0.000000e+00> : vector<8xf32>
    %13 = vector.multi_reduction <add>, %0, %cst [1] : vector<8x32xf32> to vector<8xf32>
    %14 = vector.shape_cast %13 : vector<8xf32> to vector<8x1xf32>
    %cst_5 = arith.constant 3.200000e+01 : f32
    %15 = vector.broadcast %cst_5 : f32 to vector<8x1xf32>
    %16 = arith.divf %14, %15 : vector<8x1xf32>
    %17 = vector.broadcast %16 : vector<8x1xf32> to vector<8x32xf32>
    %18 = arith.subf %0, %17 : vector<8x32xf32>
    %19 = arith.mulf %18, %18 : vector<8x32xf32>
    %cst_6 = arith.constant dense<0.000000e+00> : vector<8xf32>
    %20 = vector.multi_reduction <add>, %19, %cst_6 [1] : vector<8x32xf32> to vector<8xf32>
    %21 = vector.shape_cast %20 : vector<8xf32> to vector<8x1xf32>
    %cst_7 = arith.constant 3.200000e+01 : f32
    %22 = vector.broadcast %cst_7 : f32 to vector<8x1xf32>
    %23 = arith.divf %21, %22 : vector<8x1xf32>
    %24 = vector.broadcast %16 : vector<8x1xf32> to vector<8x32xf32>
    %25 = arith.subf %0, %24 : vector<8x32xf32>
    %cst_8 = arith.constant 9.99999974E-6 : f32
    %26 = vector.broadcast %cst_8 : f32 to vector<8x1xf32>
    %27 = arith.addf %23, %26 : vector<8x1xf32>
    %28 = math.rsqrt %27 : vector<8x1xf32>
    %29 = vector.broadcast %28 : vector<8x1xf32> to vector<8x32xf32>
    %30 = arith.mulf %25, %29 : vector<8x32xf32>
    %31 = vector.broadcast %6 : vector<1x32xf32> to vector<8x32xf32>
    %32 = arith.mulf %30, %31 : vector<8x32xf32>
    %33 = vector.broadcast %7 : vector<1x32xf32> to vector<8x32xf32>
    %34 = arith.addf %32, %33 : vector<8x32xf32>
    %35 = arith.truncf %34 : vector<8x32xf32> to vector<8x32xbf16>
    %cst_9 = arith.constant dense<0.000000e+00> : vector<8x96xf32>
    %36 = tpu.matmul %35, %2, %cst_9 {dimension_numbers = #tpu.dot_dimension_numbers<[1], [0], [0], [1], [0, 0, 1, 1], [], []>} : vector<8x32xbf16>, vector<32x96xbf16>, vector<8x96xf32> -> vector<8x96xf32>
    %37 = vector.extract_strided_slice %36 {offsets = [0, 0], sizes = [8, 24], strides = [1, 1]} : vector<8x96xf32> to vector<8x24xf32>
    %38 = vector.extract_strided_slice %36 {offsets = [0, 24], sizes = [8, 24], strides = [1, 1]} : vector<8x96xf32> to vector<8x24xf32>
    %39 = vector.extract_strided_slice %36 {offsets = [0, 48], sizes = [8, 24], strides = [1, 1]} : vector<8x96xf32> to vector<8x24xf32>
    %40 = vector.extract_strided_slice %36 {offsets = [0, 72], sizes = [8, 24], strides = [1, 1]} : vector<8x96xf32> to vector<8x24xf32>
    %41 = tpu.concatenate %37, %38, %39, %40 in 0 : vector<8x24xf32>, vector<8x24xf32>, vector<8x24xf32>, vector<8x24xf32> -> vector<32x24xf32>
    %42 = arith.truncf %41 : vector<32x24xf32> to vector<32x24xbf16>
    %43 = vector.extract_strided_slice %42 {offsets = [0, 0], sizes = [32, 8], strides = [1, 1]} : vector<32x24xbf16> to vector<32x8xbf16>
    %44 = vector.extract_strided_slice %42 {offsets = [0, 8], sizes = [32, 8], strides = [1, 1]} : vector<32x24xbf16> to vector<32x8xbf16>
    %45 = vector.extract_strided_slice %42 {offsets = [0, 16], sizes = [32, 8], strides = [1, 1]} : vector<32x24xbf16> to vector<32x8xbf16>
    %cst_10 = arith.constant dense<0.000000e+00> : vector<32x32xf32>
    %46 = tpu.matmul %43, %44, %cst_10 {dimension_numbers = #tpu.dot_dimension_numbers<[1], [1], [0], [0], [0, 0, 1, 0], [], []>} : vector<32x8xbf16>, vector<32x8xbf16>, vector<32x32xf32> -> vector<32x32xf32>
    %c0_11 = arith.constant 0 : index
    %c0_12 = arith.constant 0 : index
    %47 = vector.load %arg5[%c0_11, %c0_12] : memref<32x32xf32, #tpu.memory_space<vmem>>, vector<32x32xf32>
    %48 = arith.addf %46, %47 : vector<32x32xf32>
    %cst_13 = arith.constant dense<0xFF800000> : vector<32xf32>
    %49 = vector.multi_reduction <maximumf>, %48, %cst_13 [1] : vector<32x32xf32> to vector<32xf32>
    %50 = vector.shape_cast %49 : vector<32xf32> to vector<32x1xf32>
    %51 = vector.broadcast %50 : vector<32x1xf32> to vector<32x32xf32>
    %52 = arith.subf %48, %51 : vector<32x32xf32>
    %53 = math.exp %52 : vector<32x32xf32>
    %cst_14 = arith.constant dense<0.000000e+00> : vector<32xf32>
    %54 = vector.multi_reduction <add>, %53, %cst_14 [1] : vector<32x32xf32> to vector<32xf32>
    %55 = vector.shape_cast %54 : vector<32xf32> to vector<32x1xf32>
    %56 = vector.broadcast %55 : vector<32x1xf32> to vector<32x32xf32>
    %57 = arith.divf %53, %56 : vector<32x32xf32>
    %58 = arith.truncf %57 : vector<32x32xf32> to vector<32x32xbf16>
    %cst_15 = arith.constant dense<0.000000e+00> : vector<32x8xf32>
    %59 = tpu.matmul %58, %45, %cst_15 {dimension_numbers = #tpu.dot_dimension_numbers<[1], [0], [0], [1], [0, 0, 1, 1], [], []>} : vector<32x32xbf16>, vector<32x8xbf16>, vector<32x8xf32> -> vector<32x8xf32>
    %60 = vector.extract_strided_slice %59 {offsets = [0, 0], sizes = [8, 8], strides = [1, 1]} : vector<32x8xf32> to vector<8x8xf32>
    %61 = vector.extract_strided_slice %59 {offsets = [8, 0], sizes = [8, 8], strides = [1, 1]} : vector<32x8xf32> to vector<8x8xf32>
    %62 = vector.extract_strided_slice %59 {offsets = [16, 0], sizes = [8, 8], strides = [1, 1]} : vector<32x8xf32> to vector<8x8xf32>
    %63 = vector.extract_strided_slice %59 {offsets = [24, 0], sizes = [8, 8], strides = [1, 1]} : vector<32x8xf32> to vector<8x8xf32>
    %64 = tpu.concatenate %60, %61, %62, %63 in 1 : vector<8x8xf32>, vector<8x8xf32>, vector<8x8xf32>, vector<8x8xf32> -> vector<8x32xf32>
    %65 = arith.truncf %64 : vector<8x32xf32> to vector<8x32xbf16>
    %cst_16 = arith.constant dense<0.000000e+00> : vector<8x32xf32>
    %66 = tpu.matmul %65, %3, %cst_16 {dimension_numbers = #tpu.dot_dimension_numbers<[1], [0], [0], [1], [0, 0, 1, 1], [], []>} : vector<8x32xbf16>, vector<32x32xbf16>, vector<8x32xf32> -> vector<8x32xf32>
    %67 = vector.broadcast %8 : vector<1x32xf32> to vector<8x32xf32>
    %68 = arith.addf %66, %67 : vector<8x32xf32>
    %69 = arith.addf %0, %68 : vector<8x32xf32>
    %cst_17 = arith.constant dense<0.000000e+00> : vector<8xf32>
    %70 = vector.multi_reduction <add>, %69, %cst_17 [1] : vector<8x32xf32> to vector<8xf32>
    %71 = vector.shape_cast %70 : vector<8xf32> to vector<8x1xf32>
    %cst_18 = arith.constant 3.200000e+01 : f32
    %72 = vector.broadcast %cst_18 : f32 to vector<8x1xf32>
    %73 = arith.divf %71, %72 : vector<8x1xf32>
    %74 = vector.broadcast %73 : vector<8x1xf32> to vector<8x32xf32>
    %75 = arith.subf %69, %74 : vector<8x32xf32>
    %76 = arith.mulf %75, %75 : vector<8x32xf32>
    %cst_19 = arith.constant dense<0.000000e+00> : vector<8xf32>
    %77 = vector.multi_reduction <add>, %76, %cst_19 [1] : vector<8x32xf32> to vector<8xf32>
    %78 = vector.shape_cast %77 : vector<8xf32> to vector<8x1xf32>
    %cst_20 = arith.constant 3.200000e+01 : f32
    %79 = vector.broadcast %cst_20 : f32 to vector<8x1xf32>
    %80 = arith.divf %78, %79 : vector<8x1xf32>
    %81 = vector.broadcast %73 : vector<8x1xf32> to vector<8x32xf32>
    %82 = arith.subf %69, %81 : vector<8x32xf32>
    %cst_21 = arith.constant 9.99999974E-6 : f32
    %83 = vector.broadcast %cst_21 : f32 to vector<8x1xf32>
    %84 = arith.addf %80, %83 : vector<8x1xf32>
    %85 = math.rsqrt %84 : vector<8x1xf32>
    %86 = vector.broadcast %85 : vector<8x1xf32> to vector<8x32xf32>
    %87 = arith.mulf %82, %86 : vector<8x32xf32>
    %88 = vector.broadcast %9 : vector<1x32xf32> to vector<8x32xf32>
    %89 = arith.mulf %87, %88 : vector<8x32xf32>
    %90 = vector.broadcast %10 : vector<1x32xf32> to vector<8x32xf32>
    %91 = arith.addf %89, %90 : vector<8x32xf32>
    %92 = arith.truncf %91 : vector<8x32xf32> to vector<8x32xbf16>
    %cst_22 = arith.constant dense<0.000000e+00> : vector<8x128xf32>
    %93 = tpu.matmul %92, %4, %cst_22 {dimension_numbers = #tpu.dot_dimension_numbers<[1], [0], [0], [1], [0, 0, 1, 1], [], []>} : vector<8x32xbf16>, vector<32x128xbf16>, vector<8x128xf32> -> vector<8x128xf32>
    %94 = vector.broadcast %12 : vector<1x128xf32> to vector<8x128xf32>
    %95 = arith.addf %93, %94 : vector<8x128xf32>
    %cst_23 = arith.constant 5.000000e-01 : f32
    %96 = vector.broadcast %cst_23 : f32 to vector<8x128xf32>
    %97 = arith.mulf %96, %95 : vector<8x128xf32>
    %cst_24 = arith.constant 1.41421354 : f32
    %98 = vector.broadcast %cst_24 : f32 to vector<8x128xf32>
    %99 = arith.divf %95, %98 : vector<8x128xf32>
    %100 = math.absf %99 : vector<8x128xf32>
    %cst_25 = arith.constant 0.327591091 : f32
    %101 = vector.broadcast %cst_25 : f32 to vector<8x128xf32>
    %102 = arith.mulf %101, %100 : vector<8x128xf32>
    %cst_26 = arith.constant 1.000000e+00 : f32
    %103 = vector.broadcast %cst_26 : f32 to vector<8x128xf32>
    %104 = arith.addf %103, %102 : vector<8x128xf32>
    %cst_27 = arith.constant 1.000000e+00 : f32
    %105 = vector.broadcast %cst_27 : f32 to vector<8x128xf32>
    %106 = arith.divf %105, %104 : vector<8x128xf32>
    %cst_28 = arith.constant 1.06140542 : f32
    %107 = vector.broadcast %cst_28 : f32 to vector<8x128xf32>
    %108 = arith.mulf %106, %107 : vector<8x128xf32>
    %cst_29 = arith.constant -1.45315206 : f32
    %109 = vector.broadcast %cst_29 : f32 to vector<8x128xf32>
    %110 = arith.addf %109, %108 : vector<8x128xf32>
    %111 = arith.mulf %106, %110 : vector<8x128xf32>
    %cst_30 = arith.constant 1.42141378 : f32
    %112 = vector.broadcast %cst_30 : f32 to vector<8x128xf32>
    %113 = arith.addf %112, %111 : vector<8x128xf32>
    %114 = arith.mulf %106, %113 : vector<8x128xf32>
    %cst_31 = arith.constant -0.284496725 : f32
    %115 = vector.broadcast %cst_31 : f32 to vector<8x128xf32>
    %116 = arith.addf %115, %114 : vector<8x128xf32>
    %117 = arith.mulf %106, %116 : vector<8x128xf32>
    %cst_32 = arith.constant 0.254829586 : f32
    %118 = vector.broadcast %cst_32 : f32 to vector<8x128xf32>
    %119 = arith.addf %118, %117 : vector<8x128xf32>
    %120 = arith.mulf %106, %119 : vector<8x128xf32>
    %cst_33 = arith.constant 0.000000e+00 : f32
    %121 = vector.broadcast %cst_33 : f32 to vector<8x128xf32>
    %122 = arith.subf %121, %100 : vector<8x128xf32>
    %123 = arith.mulf %122, %100 : vector<8x128xf32>
    %124 = math.exp %123 : vector<8x128xf32>
    %125 = arith.mulf %120, %124 : vector<8x128xf32>
    %cst_34 = arith.constant 1.000000e+00 : f32
    %126 = vector.broadcast %cst_34 : f32 to vector<8x128xf32>
    %127 = arith.subf %126, %125 : vector<8x128xf32>
    %cst_35 = arith.constant 0.000000e+00 : f32
    %128 = vector.broadcast %cst_35 : f32 to vector<8x128xf32>
    %129 = arith.cmpf oge, %99, %128 : vector<8x128xf32>
    %cst_36 = arith.constant 0.000000e+00 : f32
    %130 = vector.broadcast %cst_36 : f32 to vector<8x128xf32>
    %131 = arith.subf %130, %127 : vector<8x128xf32>
    %132 = arith.select %129, %127, %131 : vector<8x128xi1>, vector<8x128xf32>
    %cst_37 = arith.constant 1.000000e+00 : f32
    %133 = vector.broadcast %cst_37 : f32 to vector<8x128xf32>
    %134 = arith.addf %133, %132 : vector<8x128xf32>
    %135 = arith.mulf %97, %134 : vector<8x128xf32>
    %136 = arith.truncf %135 : vector<8x128xf32> to vector<8x128xbf16>
    %c0_38 = arith.constant 0 : index
    %c0_39 = arith.constant 0 : index
    %137 = vector.load %arg3[%c0_38, %c0_39] : memref<128x32xbf16, #tpu.memory_space<vmem>>, vector<128x32xbf16>
    %cst_40 = arith.constant dense<0.000000e+00> : vector<8x32xf32>
    %138 = tpu.matmul %136, %137, %cst_40 {dimension_numbers = #tpu.dot_dimension_numbers<[1], [0], [0], [1], [0, 0, 1, 1], [], []>} : vector<8x128xbf16>, vector<128x32xbf16>, vector<8x32xf32> -> vector<8x32xf32>
    %139 = vector.broadcast %11 : vector<1x32xf32> to vector<8x32xf32>
    %140 = arith.addf %138, %139 : vector<8x32xf32>
    %141 = arith.addf %69, %140 : vector<8x32xf32>
    %c0_41 = arith.constant 0 : index
    %c0_42 = arith.constant 0 : index
    %142 = vector.load %arg6[%c0_41, %c0_42] : memref<8x32xf32, #tpu.memory_space<vmem>>, vector<8x32xf32>
    tpu.vector_store %arg6[%c0_41, %c0_42], %141 {strides = array<i32>} : memref<8x32xf32, #tpu.memory_space<vmem>>, vector<8x32xf32>,
    return
  }
  func.func @transform_0(%arg0: i32) -> (i32, i32) {
    %c0_i32 = arith.constant 0 : i32
    %c0_i32_0 = arith.constant 0 : i32
    return %arg0, %c0_i32 : i32, i32
  }
  func.func @transform_1(%arg0: i32) -> (i32, i32) {
    %c0_i32 = arith.constant 0 : i32
    %c0_i32_0 = arith.constant 0 : i32
    %c0_i32_1 = arith.constant 0 : i32
    return %c0_i32, %c0_i32_0 : i32, i32
  }
  func.func @transform_2(%arg0: i32) -> (i32, i32) {
    %c0_i32 = arith.constant 0 : i32
    %c0_i32_0 = arith.constant 0 : i32
    %c0_i32_1 = arith.constant 0 : i32
    return %c0_i32, %c0_i32_0 : i32, i32
  }
  func.func @transform_3(%arg0: i32) -> (i32, i32) {
    %c0_i32 = arith.constant 0 : i32
    %c0_i32_0 = arith.constant 0 : i32
    %c0_i32_1 = arith.constant 0 : i32
    return %c0_i32, %c0_i32_0 : i32, i32
  }
  func.func @transform_4(%arg0: i32) -> (i32, i32) {
    %c0_i32 = arith.constant 0 : i32
    %c0_i32_0 = arith.constant 0 : i32
    %c0_i32_1 = arith.constant 0 : i32
    return %c0_i32, %c0_i32_0 : i32, i32
  }
  func.func @transform_5(%arg0: i32) -> (i32, i32) {
    %c0_i32 = arith.constant 0 : i32
    %c0_i32_0 = arith.constant 0 : i32
    return %arg0, %c0_i32 : i32, i32
  }
}

</mosaic_0001>

<llo_original>
// kernel: vit_block_pallas.1
$region0: #{vit_block_pallas.1}
  #allocation0 [shape = 'u32[]', space=smem, size = 0x4, offset = 0x4, fixed_abs, tag = 'smem constant byte address 0x4 - core index']
  #allocation1 [shape = 'u32[144,128]{1,0:T(1,128)}', space=vmem, size = 0x12000, scoped, tag = 'internal scratch']
  %s0 = inlined_call_operand.vmem [shape: f32[16,32], index: 0, kind: input, shape index: {}]
  %s1 = inlined_call_operand.vmem [shape: bf16[32,256], index: 1, kind: input, shape index: {}]
  %s2 = inlined_call_operand.vmem [shape: bf16[128,32], index: 2, kind: input, shape index: {}]
  %s3 = inlined_call_operand.vmem [shape: f32[8,128], index: 3, kind: input, shape index: {}]
  %s4 = inlined_call_operand.vmem [shape: f32[32,32], index: 4, kind: input, shape index: {}]
  %s5 = inlined_call_operand.hbm [shape: f32[16,32], index: 5, kind: output, shape index: {}]
  %s6 = sld [smem:[#allocation0]]
  $region53: #{vit_block_pallas.1} parent=0
    _
  %s8 = ssub.s32 1, %s6
  %s9 = scalar_select 0, %s8, %s6
  $region1: #{vit_block_pallas.1} parent=0
    #allocation2 [shape = 'u8[8192]{0}', space=vmem, size = 0x2000, scoped, tag = 'output window, operand 0']
    #allocation3 [shape = 's32[2]{0}', space=sflag, size = 0x8, scoped, tag = 'scoped memory for vit_block_pallas.1']
    %10 = vsyncpa [#allocation3], 0
    %s11 = scalar_lea.sflag [#allocation3], 1
    %12 = vsyncpa %s11, 0
    loop: start=0, step=1, limit=4
    $region2: #{vit_block_pallas.1} parent=1 // loop_pre_header
      _
    $region3: #{vit_block_pallas.1} parent=1 // loop_header
      %s14 = sphi 0, %s18
      %p15 = scmp.ge.s32.totalorder %s14, 4
      %s24 = sphi 0, %s26
      %s27 = sphi 0, %s24
      %s28 = sphi 0, %s27
      %s44 = sphi 0, %s28
      %s48 = sphi 0, %s48
      %s50 = sphi 0, %s48
      %s51 = sphi 0, %s50
      %s65 = sphi 0, %s51
      %s69 = sphi 0, %s69
      %s71 = sphi 0, %s69
      %s72 = sphi 0, %s71
      %s86 = sphi 0, %s72
      %s90 = sphi 0, %s90
      %s92 = sphi 0, %s90
      %s93 = sphi 0, %s92
      %s107 = sphi 0, %s93
      %s111 = sphi 0, %s111
      %s113 = sphi 0, %s111
      %s114 = sphi 0, %s113
      %s128 = sphi 0, %s114
      %s134 = sphi 0, %s136
      %s137 = sphi 0, %s134
      %s138 = sphi 0, %s137
      %s154 = sphi 0, %s138
    $region4: #{vit_block_pallas.1} parent=1 // loop_header_branch
      %17 = sbr.rel (%p15) target = $region8
    $region5: #{vit_block_pallas.1} parent=1 // loop_body
      %s19 = ssub.s32 %s14, 1
      %s20 = ssub.s32 %s14, 2
      %s21 = sadd.s32 %s14, 1
      %s22 = ssub.s32 %s14, %s21
      %p23 = scmp.eq.s32.totalorder %s22, 0
      %s25 = sadd.s32 %s24, 1
      %s26 = scalar_select %p23, %s24, %s25
      %p29 = pneg %p23
      %p30 = scmp.eq.s32.totalorder %s14, 1
      %p31 = por %p29, %p30
      %p32 = scmp.ne.s32.totalorder %s24, %s27
      %p33 = scmp.eq.s32.totalorder %s14, 0
      %p34 = por %p32, %p33
      %p35 = scmp.ne.s32.totalorder %s24, %s27
      %p36 = scmp.eq.s32.totalorder %s19, 1
      %p37 = por %p35, %p36
      %p38 = scmp.ne.s32.totalorder %s27, %s28
      %p39 = scmp.eq.s32.totalorder %s19, 0
      %p40 = por %p38, %p39
      %p41 = scmp.ne.s32.totalorder %s27, %s28
      %p42 = scmp.eq.s32.totalorder %s20, 1
      %p43 = por %p41, %p42
      %p45 = scmp.ne.s32.totalorder %s28, %s44
      %p46 = scmp.eq.s32.totalorder %s20, 0
      %p47 = por %p45, %p46
      %s49 = sadd.s32 %s48, 1
      %p52 = scmp.eq.s32.totalorder %s14, 1
      %p53 = scmp.ne.s32.totalorder %s48, %s50
      %p54 = scmp.eq.s32.totalorder %s14, 0
      %p55 = por %p53, %p54
      %p56 = scmp.ne.s32.totalorder %s48, %s50
      %p57 = scmp.eq.s32.totalorder %s19, 1
      %p58 = por %p56, %p57
      %p59 = scmp.ne.s32.totalorder %s50, %s51
      %p60 = scmp.eq.s32.totalorder %s19, 0
      %p61 = por %p59, %p60
      %p62 = scmp.ne.s32.totalorder %s50, %s51
      %p63 = scmp.eq.s32.totalorder %s20, 1
      %p64 = por %p62, %p63
      %p66 = scmp.ne.s32.totalorder %s51, %s65
      %p67 = scmp.eq.s32.totalorder %s20, 0
      %p68 = por %p66, %p67
      %s70 = sadd.s32 %s69, 1
      %p73 = scmp.eq.s32.totalorder %s14, 1
      %p74 = scmp.ne.s32.totalorder %s69, %s71
      %p75 = scmp.eq.s32.totalorder %s14, 0
      %p76 = por %p74, %p75
      %p77 = scmp.ne.s32.totalorder %s69, %s71
      %p78 = scmp.eq.s32.totalorder %s19, 1
      %p79 = por %p77, %p78
      %p80 = scmp.ne.s32.totalorder %s71, %s72
      %p81 = scmp.eq.s32.totalorder %s19, 0
      %p82 = por %p80, %p81
      %p83 = scmp.ne.s32.totalorder %s71, %s72
      %p84 = scmp.eq.s32.totalorder %s20, 1
      %p85 = por %p83, %p84
      %p87 = scmp.ne.s32.totalorder %s72, %s86
      %p88 = scmp.eq.s32.totalorder %s20, 0
      %p89 = por %p87, %p88
      %s91 = sadd.s32 %s90, 1
      %p94 = scmp.eq.s32.totalorder %s14, 1
      %p95 = scmp.ne.s32.totalorder %s90, %s92
      %p96 = scmp.eq.s32.totalorder %s14, 0
      %p97 = por %p95, %p96
      %p98 = scmp.ne.s32.totalorder %s90, %s92
      %p99 = scmp.eq.s32.totalorder %s19, 1
      %p100 = por %p98, %p99
      %p101 = scmp.ne.s32.totalorder %s92, %s93
      %p102 = scmp.eq.s32.totalorder %s19, 0
      %p103 = por %p101, %p102
      %p104 = scmp.ne.s32.totalorder %s92, %s93
      %p105 = scmp.eq.s32.totalorder %s20, 1
      %p106 = por %p104, %p105
      %p108 = scmp.ne.s32.totalorder %s93, %s107
      %p109 = scmp.eq.s32.totalorder %s20, 0
      %p110 = por %p108, %p109
      %s112 = sadd.s32 %s111, 1
      %p115 = scmp.eq.s32.totalorder %s14, 1
      %p116 = scmp.ne.s32.totalorder %s111, %s113
      %p117 = scmp.eq.s32.totalorder %s14, 0
      %p118 = por %p116, %p117
      %p119 = scmp.ne.s32.totalorder %s111, %s113
      %p120 = scmp.eq.s32.totalorder %s19, 1
      %p121 = por %p119, %p120
      %p122 = scmp.ne.s32.totalorder %s113, %s114
      %p123 = scmp.eq.s32.totalorder %s19, 0
      %p124 = por %p122, %p123
      %p125 = scmp.ne.s32.totalorder %s113, %s114
      %p126 = scmp.eq.s32.totalorder %s20, 1
      %p127 = por %p125, %p126
      %p129 = scmp.ne.s32.totalorder %s114, %s128
      %p130 = scmp.eq.s32.totalorder %s20, 0
      %p131 = por %p129, %p130
      %s132 = ssub.s32 %s14, %s21
      %p133 = scmp.eq.s32.totalorder %s132, 0
      %s135 = sadd.s32 %s134, 1
      %s136 = scalar_select %p133, %s134, %s135
      %p139 = pneg %p133
      %p140 = scmp.eq.s32.totalorder %s14, 1
      %p141 = por %p139, %p140
      %p142 = scmp.ne.s32.totalorder %s134, %s137
      %p143 = scmp.eq.s32.totalorder %s14, 0
      %p144 = por %p142, %p143
      %p145 = scmp.ne.s32.totalorder %s134, %s137
      %p146 = scmp.eq.s32.totalorder %s19, 1
      %p147 = por %p145, %p146
      %p148 = scmp.ne.s32.totalorder %s137, %s138
      %p149 = scmp.eq.s32.totalorder %s19, 0
      %p150 = por %p148, %p149
      %p151 = scmp.ne.s32.totalorder %s137, %s138
      %p152 = scmp.eq.s32.totalorder %s20, 1
      %p153 = por %p151, %p152
      %p155 = scmp.ne.s32.totalorder %s138, %s154
      %p156 = scmp.eq.s32.totalorder %s20, 0
      %p157 = por %p155, %p156
      %p158 = scmp.le.s32.totalorder 1, %s14
      %p159 = scmp.lt.s32.totalorder %s14, 3
      %p160 = pnand %p158, %p159
      %p161 = pneg %p160
      // Predicated region
      $region9: #{vit_block_pallas.1} parent=5 // pred_check
        _
      $region10: #{vit_block_pallas.1} parent=5 // pred_check_branch
        %163 = sbr.rel (%p160) target = $region12
      $region11: #{vit_block_pallas.1} parent=5 // pred_region
        %s164 = ssub.s32 %s14, 1
        // Predicated region
        $region13: #{vit_block_pallas.1} parent=11 // pred_check
          %p165 = pneg %p61
        $region14: #{vit_block_pallas.1} parent=11 // pred_check_branch
          %167 = sbr.rel (%p165) target = $region16
        $region15: #{vit_block_pallas.1} parent=11 // pred_region
          _
        $region16: #{vit_block_pallas.1} parent=11 // pred_fallthru
          _
        // Predicated region
        $region17: #{vit_block_pallas.1} parent=11 // pred_check
          %p168 = pneg %p82
        $region18: #{vit_block_pallas.1} parent=11 // pred_check_branch
          %170 = sbr.rel (%p168) target = $region20
        $region19: #{vit_block_pallas.1} parent=11 // pred_region
          _
        $region20: #{vit_block_pallas.1} parent=11 // pred_fallthru
          _
        // Predicated region
        $region21: #{vit_block_pallas.1} parent=11 // pred_check
          %p171 = pneg %p103
        $region22: #{vit_block_pallas.1} parent=11 // pred_check_branch
          %173 = sbr.rel (%p171) target = $region24
        $region23: #{vit_block_pallas.1} parent=11 // pred_region
          _
        $region24: #{vit_block_pallas.1} parent=11 // pred_fallthru
          _
        // Predicated region
        $region25: #{vit_block_pallas.1} parent=11 // pred_check
          %p174 = pneg %p124
        $region26: #{vit_block_pallas.1} parent=11 // pred_check_branch
          %176 = sbr.rel (%p174) target = $region28
        $region27: #{vit_block_pallas.1} parent=11 // pred_region
          _
        $region28: #{vit_block_pallas.1} parent=11 // pred_fallthru
          _
      $region12: #{vit_block_pallas.1} parent=5 // pred_fallthru
        _
      %p177 = scmp.lt.s32.totalorder %s14, 2
      // Predicated region
      $region29: #{vit_block_pallas.1} parent=5 // pred_check
        %p178 = pneg %p177
      $region30: #{vit_block_pallas.1} parent=5 // pred_check_branch
        %180 = sbr.rel (%p178) target = $region32
      $region31: #{vit_block_pallas.1} parent=5 // pred_region
        // Predicated region
        $region33: #{vit_block_pallas.1} parent=31 // pred_check
          %p181 = pneg %p34
        $region34: #{vit_block_pallas.1} parent=31 // pred_check_branch
          %183 = sbr.rel (%p181) target = $region36
        $region35: #{vit_block_pallas.1} parent=31 // pred_region
          %p184 = scmp.lt.s32.totalorder %s14, 1
          %s185 = scalar_select %p184, %s14, 1
          %s186 = smul.addr %s185, 8
          %s187 = scalar_lea.vmem %s0, %s186
        $region36: #{vit_block_pallas.1} parent=31 // pred_fallthru
          _
      $region32: #{vit_block_pallas.1} parent=5 // pred_fallthru
        _
      %p188 = scmp.le.s32.totalorder 1, %s14
      %p189 = scmp.lt.s32.totalorder %s14, 3
      %p190 = pnand %p188, %p189
      %p191 = pneg %p190
      // Predicated region
      $region37: #{vit_block_pallas.1} parent=5 // pred_check
        _
      $region38: #{vit_block_pallas.1} parent=5 // pred_check_branch
        %193 = sbr.rel (%p190) target = $region40
      $region39: #{vit_block_pallas.1} parent=5 // pred_region
        %s194 = ssub.s32 %s14, 1
        %p195 = scmp.lt.s32.totalorder %s19, 1
        %s196 = scalar_select %p195, %s19, 1
        %s197 = smul.addr %s196, 8
        %s198 = scalar_lea.vmem %s0, %s197
        %p199 = pneg %p40
        %p200 = pneg %p37
        %p201 = pneg %p61
        %p202 = pneg %p58
        %p203 = pneg %p82
        %p204 = pneg %p79
        %p205 = pneg %p103
        %p206 = pneg %p100
        %p207 = pneg %p124
        %p208 = pneg %p121
        %p209 = pneg %p150
        %p210 = pneg %p147
        %s211 = sand.u32 %s137, 1
        %s212 = scalar_lea.sflag [#allocation3], %s211
        %s213 = sand.u32 %s137, 1
        %s214 = smul.addr %s213, 8
        %s215 = scalar_lea.vmem [#allocation2], %s214
        %p216 = scmp.lt.s32.totalorder %s19, 1
        %s217 = scalar_select %p216, %s19, 1
        %s218 = smul.addr %s217, 8
        %s219 = scalar_lea.vmem %s0, %s218
        %v221 = vld [vmem:[%s219] sm:$0xff]
        %v222 = vld [vmem:[%s1] sm:$0xff]
        %v223 = vld [vmem:[%s1 + $0x8] sm:$0xff]
        %v224 = vld [vmem:[%s1 + $0x10] sm:$0xff]
        %v225 = vld [vmem:[%s1 + $0x18] sm:$0xff]
        %v226 = vld [vmem:[%s3] sm:$0xff]
        %vm227 = vcmask 261120
        %v228 = vsel %vm227, %v221, 0.0
        %229 = vadd.xlane.f32.xlu0 %v228
        %v230 = vpop.xlane.xlu0 %229
        %v231 = vrcp.pop 32.0
        %v232 = vmul.f32 %v230, %v231
        %v233 = vsub.f32 %v221, %v232
        %v234 = vmul.f32 %v233, %v233
        %v235 = vsel %vm227, %v234, 0.0
        %236 = vadd.xlane.f32.xlu0 %v235
        %v237 = vpop.xlane.xlu0 %236
        %v238 = vmul.f32 %v237, %v231
        %v239 = vadd.f32 %v238, 1e-05
        %v240 = vrsqrt.pop %v239
        %v241 = vmul.f32 %v233, %v240
        %v242 = vlaneseq
        %v243 = vshrl.u32 %v242, 7
        %v244 = vsub.s32 0, %v243
        %v245 = vrot.slane %v226, %v244
        %v246 = vmul.f32 %v241, %v245
        %v247 = vlaneseq
        %v248 = vshrl.u32 %v247, 7
        %v249 = vsub.s32 1, %v248
        %v250 = vrot.slane %v226, %v249
        %v251 = vadd.f32 %v246, %v250
        %v252 = vpack.c.bf16 %v251, %v251
        %v257 = vunpack.c.l.b16 %v222
        %v258 = vunpack.c.l.b16 %v223
        %v259 = vunpack.c.l.b16 %v224
        %v260 = vunpack.c.l.b16 %v225
        %v261 = vpack.c.b16 %v258, %v257
        %v262 = vpack.c.b16 %v260, %v259
        %v266 = vsel %vm227, %v252, 0
        %268 = vmatprep.subr.bf16.mxu0 0
        %269 = vmatpush1.bf16.msra.mxu0 %v261
        %270 = vmatprep.subr.bf16.mxu0 0
        %271 = vmatpush1.bf16.msra.mxu0 %v262
        %272 = vmatprep.subr.bf16.mxu0 0
        %273 = vmatpush1.bf16.msra.mxu0 0
        %274 = vmatprep.subr.bf16.mxu0 0
        %275 = vmatpush1.bf16.msra.mxu0 0
        %276 = vmatprep.subr.bf16.mxu0 0
        %277 = vmatpush1.bf16.msra.mxu0 0
        %278 = vmatprep.subr.bf16.mxu0 0
        %279 = vmatpush1.bf16.msra.mxu0 0
        %280 = vmatprep.subr.bf16.mxu0 0
        %281 = vmatpush1.bf16.msra.mxu0 0
        %282 = vmatprep.subr.bf16.mxu0 0
        %283 = vmatpush1.bf16.msra.mxu0 0
        %284 = vmatprep.subr.bf16.mxu0 0
        %285 = vmatpush1.bf16.msra.mxu0 0
        %286 = vmatprep.subr.bf16.mxu0 0
        %287 = vmatpush1.bf16.msra.mxu0 0
        %288 = vmatprep.subr.bf16.mxu0 0
        %289 = vmatpush1.bf16.msra.mxu0 0
        %290 = vmatprep.subr.bf16.mxu0 0
        %291 = vmatpush1.bf16.msra.mxu0 0
        %292 = vmatprep.subr.bf16.mxu0 0
        %293 = vmatpush1.bf16.msra.mxu0 0
        %294 = vmatprep.subr.bf16.mxu0 0
        %295 = vmatpush1.bf16.msra.mxu0 0
        %296 = vmatprep.subr.bf16.mxu0 0
        %297 = vmatpush1.bf16.msra.mxu0 0
        %298 = vmatprep.subr.bf16.mxu0 0
        %299 = vmatpush1.bf16.msra.mxu0 0
        %300 = vmatprep.mubr.bf16.mxu0 0
        %301 = vmatmul.mubr.bf16.gmra.mrb[0].mxu0 %v266
        %v302 = vpop.f32.mrb[0].mxu0
        %v303 = vadd.f32 0.0, %v302
        %v304 = vpop.f32.mrb[0].mxu0
        %v305 = vpop.f32.mrb[0].mxu0
        %v306 = vpop.f32.mrb[0].mxu0
        %307 = vdwg.mxu0
        %309 = vrot.lane.b32.xlu0 %v303, 104
        %v310 = vpop.permute.xlu0 %309
        %312 = vrot.lane.b32.xlu0 %v303, 80
        %v313 = vpop.permute.xlu0 %312
        %315 = vrot.lane.b32.xlu0 %v303, 56
        %v316 = vpop.permute.xlu0 %315
        %v318 = vpack.c.bf16 %v310, %v303
        %v319 = vpack.c.bf16 %v316, %v313
        %v320 = vld [vmem:[%s4] sm:$0xff]
        %v321 = vld [vmem:[%s4 + $0x8] sm:$0xff]
        %v322 = vld [vmem:[%s4 + $0x10] sm:$0xff]
        %v323 = vld [vmem:[%s4 + $0x18] sm:$0xff]
        %326 = vrot.lane.b32.xlu0 %v318, 120
        %v327 = vpop.permute.xlu0 %326
        %328 = vrot.lane.b32.xlu0 %v319, 120
        %v329 = vpop.permute.xlu0 %328
        %vm330 = vcmask 64512
        %v332 = vsel %vm330, %v318, 0
        %v335 = vsel %vm330, %v319, 0
        %v338 = vsel %vm330, %v327, 0
        %v341 = vsel %vm330, %v329, 0
        %343 = vmatprep.subr.bf16.mxu0 0
        %344 = vmatpush1.bf16.xpose.msra.mxu0 %v338
        %345 = vmatprep.subr.bf16.mxu0 0
        %346 = vmatpush1.bf16.xpose.msra.mxu0 %v341
        %347 = vmatprep.subr.bf16.mxu0 0
        %348 = vmatpush1.bf16.xpose.msra.mxu0 0
        %349 = vmatprep.subr.bf16.mxu0 0
        %350 = vmatpush1.bf16.xpose.msra.mxu0 0
        %351 = vmatprep.subr.bf16.mxu0 0
        %352 = vmatpush1.bf16.xpose.msra.mxu0 0
        %353 = vmatprep.subr.bf16.mxu0 0
        %354 = vmatpush1.bf16.xpose.msra.mxu0 0
        %355 = vmatprep.subr.bf16.mxu0 0
        %356 = vmatpush1.bf16.xpose.msra.mxu0 0
        %357 = vmatprep.subr.bf16.mxu0 0
        %358 = vmatpush1.bf16.xpose.msra.mxu0 0
        %359 = vmatprep.subr.bf16.mxu0 0
        %360 = vmatpush1.bf16.xpose.msra.mxu0 0
        %361 = vmatprep.subr.bf16.mxu0 0
        %362 = vmatpush1.bf16.xpose.msra.mxu0 0
        %363 = vmatprep.subr.bf16.mxu0 0
        %364 = vmatpush1.bf16.xpose.msra.mxu0 0
        %365 = vmatprep.subr.bf16.mxu0 0
        %366 = vmatpush1.bf16.xpose.msra.mxu0 0
        %367 = vmatprep.subr.bf16.mxu0 0
        %368 = vmatpush1.bf16.xpose.msra.mxu0 0
        %369 = vmatprep.subr.bf16.mxu0 0
        %370 = vmatpush1.bf16.xpose.msra.mxu0 0
        %371 = vmatprep.subr.bf16.mxu0 0
        %372 = vmatpush1.bf16.xpose.msra.mxu0 0
        %373 = vmatprep.subr.bf16.mxu0 0
        %374 = vmatpush1.bf16.xpose.msra.mxu0 0
        %375 = vmatprep.mubr.bf16.mxu0 0
        %376 = vmatmul.mubr.bf16.gmra.mrb[0].mxu0 %v332
        %v377 = vpop.f32.mrb[0].mxu0
        %v378 = vadd.f32 %v320, %v377
        %v379 = vpop.f32.mrb[0].mxu0
        %v380 = vpop.f32.mrb[0].mxu0
        %v381 = vadd.f32 %v321, %v380
        %v382 = vpop.f32.mrb[0].mxu0
        %383 = vmatprep.mubr.bf16.mxu0 0
        %384 = vmatmul.mubr.bf16.gmra.mrb[0].mxu0 %v335
        %v385 = vpop.f32.mrb[0].mxu0
        %v386 = vadd.f32 %v322, %v385
        %v387 = vpop.f32.mrb[0].mxu0
        %v388 = vpop.f32.mrb[0].mxu0
        %v389 = vadd.f32 %v323, %v388
        %v390 = vpop.f32.mrb[0].mxu0
        %391 = vdwg.mxu0
        %v392 = vsel %vm227, %v378, -inf
        %393 = vmax.xlane.f32.xlu0 %v392
        %v394 = vpop.xlane.xlu0 %393
        %v395 = vsel %vm227, %v381, -inf
        %396 = vmax.xlane.f32.xlu0 %v395
        %v397 = vpop.xlane.xlu0 %396
        %v398 = vsel %vm227, %v386, -inf
        %399 = vmax.xlane.f32.xlu0 %v398
        %v400 = vpop.xlane.xlu0 %399
        %v401 = vsel %vm227, %v389, -inf
        %402 = vmax.xlane.f32.xlu0 %v401
        %v403 = vpop.xlane.xlu0 %402
        %v404 = vsub.f32 %v378, %v394
        %v405 = vsub.f32 %v381, %v397
        %v406 = vsub.f32 %v386, %v400
        %v407 = vsub.f32 %v389, %v403
        %v408 = vmul.f32 %v404, 1.442695
        %v409 = vpow.pop %v408
        %v410 = vmul.f32 %v405, 1.442695
        %v411 = vpow.pop %v410
        %v412 = vmul.f32 %v406, 1.442695
        %v413 = vpow.pop %v412
        %v414 = vmul.f32 %v407, 1.442695
        %v415 = vpow.pop %v414
        %v416 = vsel %vm227, %v409, 0.0
        %417 = vadd.xlane.f32.xlu0 %v416
        %v418 = vpop.xlane.xlu0 %417
        %v419 = vsel %vm227, %v411, 0.0
        %420 = vadd.xlane.f32.xlu0 %v419
        %v421 = vpop.xlane.xlu0 %420
        %v422 = vsel %vm227, %v413, 0.0
        %423 = vadd.xlane.f32.xlu0 %v422
        %v424 = vpop.xlane.xlu0 %423
        %v425 = vsel %vm227, %v415, 0.0
        %426 = vadd.xlane.f32.xlu0 %v425
        %v427 = vpop.xlane.xlu0 %426
        %v428 = vrcp.pop %v418
        %v429 = vmul.f32 %v409, %v428
        %v430 = vrcp.pop %v421
        %v431 = vmul.f32 %v411, %v430
        %v432 = vrcp.pop %v424
        %v433 = vmul.f32 %v413, %v432
        %v434 = vrcp.pop %v427
        %v435 = vmul.f32 %v415, %v434
        %v436 = vpack.c.bf16 %v431, %v429
        %v437 = vpack.c.bf16 %v435, %v433
        %438 = vrot.lane.b32.xlu0 %v318, 112
        %v439 = vpop.permute.xlu0 %438
        %440 = vrot.lane.b32.xlu0 %v319, 112
        %v441 = vpop.permute.xlu0 %440
        %v445 = vsel %vm227, %v436, 0
        %v448 = vsel %vm227, %v437, 0
        %450 = vmatprep.subr.bf16.mxu0 0
        %451 = vmatpush1.bf16.msra.mxu0 %v439
        %452 = vmatprep.subr.bf16.mxu0 0
        %453 = vmatpush1.bf16.msra.mxu0 %v441
        %454 = vmatprep.subr.bf16.mxu0 0
        %455 = vmatpush1.bf16.msra.mxu0 0
        %456 = vmatprep.subr.bf16.mxu0 0
        %457 = vmatpush1.bf16.msra.mxu0 0
        %458 = vmatprep.subr.bf16.mxu0 0
        %459 = vmatpush1.bf16.msra.mxu0 0
        %460 = vmatprep.subr.bf16.mxu0 0
        %461 = vmatpush1.bf16.msra.mxu0 0
        %462 = vmatprep.subr.bf16.mxu0 0
        %463 = vmatpush1.bf16.msra.mxu0 0
        %464 = vmatprep.subr.bf16.mxu0 0
        %465 = vmatpush1.bf16.msra.mxu0 0
        %466 = vmatprep.subr.bf16.mxu0 0
        %467 = vmatpush1.bf16.msra.mxu0 0
        %468 = vmatprep.subr.bf16.mxu0 0
        %469 = vmatpush1.bf16.msra.mxu0 0
        %470 = vmatprep.subr.bf16.mxu0 0
        %471 = vmatpush1.bf16.msra.mxu0 0
        %472 = vmatprep.subr.bf16.mxu0 0
        %473 = vmatpush1.bf16.msra.mxu0 0
        %474 = vmatprep.subr.bf16.mxu0 0
        %475 = vmatpush1.bf16.msra.mxu0 0
        %476 = vmatprep.subr.bf16.mxu0 0
        %477 = vmatpush1.bf16.msra.mxu0 0
        %478 = vmatprep.subr.bf16.mxu0 0
        %479 = vmatpush1.bf16.msra.mxu0 0
        %480 = vmatprep.subr.bf16.mxu0 0
        %481 = vmatpush1.bf16.msra.mxu0 0
        %482 = vmatprep.mubr.bf16.mxu0 0
        %483 = vmatmul.mubr.bf16.gmra.mrb[0].mxu0 %v445
        %v484 = vpop.f32.mrb[0].mxu0
        %v485 = vadd.f32 0.0, %v484
        %v486 = vpop.f32.mrb[0].mxu0
        %v487 = vpop.f32.mrb[0].mxu0
        %v488 = vadd.f32 0.0, %v487
        %v489 = vpop.f32.mrb[0].mxu0
        %490 = vmatprep.mubr.bf16.mxu0 0
        %491 = vmatmul.mubr.bf16.gmra.mrb[0].mxu0 %v448
        %v492 = vpop.f32.mrb[0].mxu0
        %v493 = vadd.f32 0.0, %v492
        %v494 = vpop.f32.mrb[0].mxu0
        %v495 = vpop.f32.mrb[0].mxu0
        %v496 = vadd.f32 0.0, %v495
        %v497 = vpop.f32.mrb[0].mxu0
        %498 = vdwg.mxu0
        %500 = vrot.lane.b32.xlu0 %v488, 8
        %v501 = vpop.permute.xlu0 %500
        %504 = vrot.lane.b32.xlu0 %v493, 16
        %v505 = vpop.permute.xlu0 %504
        %508 = vrot.lane.b32.xlu0 %v496, 24
        %v509 = vpop.permute.xlu0 %508
        %v511 = vsel %vm330, %v485, %v501
        %vm512 = vcmask 130048
        %v513 = vsel %vm512, %v511, %v505
        %vm514 = vcmask 195584
        %v515 = vsel %vm514, %v513, %v509
        %v516 = vpack.c.bf16 %v515, %v515
        %v517 = vlaneseq
        %v518 = vshrl.u32 %v517, 7
        %v519 = vsub.s32 2, %v518
        %v520 = vrot.slane %v226, %v519
        %521 = vrot.lane.b32.xlu0 %v261, 32
        %v522 = vpop.permute.xlu0 %521
        %523 = vrot.lane.b32.xlu0 %v262, 32
        %v524 = vpop.permute.xlu0 %523
        %v528 = vsel %vm227, %v516, 0
        %530 = vmatprep.subr.bf16.mxu0 0
        %531 = vmatpush1.bf16.msra.mxu0 %v522
        %532 = vmatprep.subr.bf16.mxu0 0
        %533 = vmatpush1.bf16.msra.mxu0 %v524
        %534 = vmatprep.subr.bf16.mxu0 0
        %535 = vmatpush1.bf16.msra.mxu0 0
        %536 = vmatprep.subr.bf16.mxu0 0
        %537 = vmatpush1.bf16.msra.mxu0 0
        %538 = vmatprep.subr.bf16.mxu0 0
        %539 = vmatpush1.bf16.msra.mxu0 0
        %540 = vmatprep.subr.bf16.mxu0 0
        %541 = vmatpush1.bf16.msra.mxu0 0
        %542 = vmatprep.subr.bf16.mxu0 0
        %543 = vmatpush1.bf16.msra.mxu0 0
        %544 = vmatprep.subr.bf16.mxu0 0
        %545 = vmatpush1.bf16.msra.mxu0 0
        %546 = vmatprep.subr.bf16.mxu0 0
        %547 = vmatpush1.bf16.msra.mxu0 0
        %548 = vmatprep.subr.bf16.mxu0 0
        %549 = vmatpush1.bf16.msra.mxu0 0
        %550 = vmatprep.subr.bf16.mxu0 0
        %551 = vmatpush1.bf16.msra.mxu0 0
        %552 = vmatprep.subr.bf16.mxu0 0
        %553 = vmatpush1.bf16.msra.mxu0 0
        %554 = vmatprep.subr.bf16.mxu0 0
        %555 = vmatpush1.bf16.msra.mxu0 0
        %556 = vmatprep.subr.bf16.mxu0 0
        %557 = vmatpush1.bf16.msra.mxu0 0
        %558 = vmatprep.subr.bf16.mxu0 0
        %559 = vmatpush1.bf16.msra.mxu0 0
        %560 = vmatprep.subr.bf16.mxu0 0
        %561 = vmatpush1.bf16.msra.mxu0 0
        %562 = vmatprep.mubr.bf16.mxu0 0
        %563 = vmatmul.mubr.bf16.gmra.mrb[0].mxu0 %v528
        %v564 = vpop.f32.mrb[0].mxu0
        %v565 = vadd.f32 %v520, %v564
        %v566 = vpop.f32.mrb[0].mxu0
        %v567 = vpop.f32.mrb[0].mxu0
        %v568 = vpop.f32.mrb[0].mxu0
        %569 = vdwg.mxu0
        %v570 = vadd.f32 %v221, %v565
        %v571 = vsel %vm227, %v570, 0.0
        %572 = vadd.xlane.f32.xlu0 %v571
        %v573 = vpop.xlane.xlu0 %572
        %v574 = vmul.f32 %v573, %v231
        %v575 = vsub.f32 %v570, %v574
        %v576 = vmul.f32 %v575, %v575
        %v577 = vsel %vm227, %v576, 0.0
        %578 = vadd.xlane.f32.xlu0 %v577
        %v579 = vpop.xlane.xlu0 %578
        %v580 = vmul.f32 %v579, %v231
        %v581 = vadd.f32 %v580, 1e-05
        %v582 = vrsqrt.pop %v581
        %v583 = vmul.f32 %v575, %v582
        %v584 = vlaneseq
        %v585 = vshrl.u32 %v584, 7
        %v586 = vsub.s32 3, %v585
        %v587 = vrot.slane %v226, %v586
        %v588 = vmul.f32 %v583, %v587
        %v589 = vlaneseq
        %v590 = vshrl.u32 %v589, 7
        %v591 = vsub.s32 4, %v590
        %v592 = vrot.slane %v226, %v591
        %v593 = vadd.f32 %v588, %v592
        %v594 = vpack.c.bf16 %v593, %v593
        %v595 = vlaneseq
        %v596 = vshrl.u32 %v595, 7
        %v597 = vsub.s32 6, %v596
        %v598 = vrot.slane %v226, %v597
        %v599 = vunpack.c.h.b16 %v222
        %v600 = vunpack.c.h.b16 %v223
        %v601 = vunpack.c.h.b16 %v224
        %v602 = vunpack.c.h.b16 %v225
        %v603 = vpack.c.b16 %v600, %v599
        %v604 = vpack.c.b16 %v602, %v601
        %v608 = vsel %vm227, %v594, 0
        %610 = vmatprep.subr.bf16.mxu0 0
        %611 = vmatpush1.bf16.msra.mxu0 %v603
        %612 = vmatprep.subr.bf16.mxu0 0
        %613 = vmatpush1.bf16.msra.mxu0 %v604
        %614 = vmatprep.subr.bf16.mxu0 0
        %615 = vmatpush1.bf16.msra.mxu0 0
        %616 = vmatprep.subr.bf16.mxu0 0
        %617 = vmatpush1.bf16.msra.mxu0 0
        %618 = vmatprep.subr.bf16.mxu0 0
        %619 = vmatpush1.bf16.msra.mxu0 0
        %620 = vmatprep.subr.bf16.mxu0 0
        %621 = vmatpush1.bf16.msra.mxu0 0
        %622 = vmatprep.subr.bf16.mxu0 0
        %623 = vmatpush1.bf16.msra.mxu0 0
        %624 = vmatprep.subr.bf16.mxu0 0
        %625 = vmatpush1.bf16.msra.mxu0 0
        %626 = vmatprep.subr.bf16.mxu0 0
        %627 = vmatpush1.bf16.msra.mxu0 0
        %628 = vmatprep.subr.bf16.mxu0 0
        %629 = vmatpush1.bf16.msra.mxu0 0
        %630 = vmatprep.subr.bf16.mxu0 0
        %631 = vmatpush1.bf16.msra.mxu0 0
        %632 = vmatprep.subr.bf16.mxu0 0
        %633 = vmatpush1.bf16.msra.mxu0 0
        %634 = vmatprep.subr.bf16.mxu0 0
        %635 = vmatpush1.bf16.msra.mxu0 0
        %636 = vmatprep.subr.bf16.mxu0 0
        %637 = vmatpush1.bf16.msra.mxu0 0
        %638 = vmatprep.subr.bf16.mxu0 0
        %639 = vmatpush1.bf16.msra.mxu0 0
        %640 = vmatprep.subr.bf16.mxu0 0
        %641 = vmatpush1.bf16.msra.mxu0 0
        %642 = vmatprep.mubr.bf16.mxu0 0
        %643 = vmatmul.mubr.bf16.gmra.mrb[0].mxu0 %v608
        %v644 = vpop.f32.mrb[0].mxu0
        %v645 = vadd.f32 %v598, %v644
        %v646 = vpop.f32.mrb[0].mxu0
        %v647 = vpop.f32.mrb[0].mxu0
        %v648 = vpop.f32.mrb[0].mxu0
        %649 = vdwg.mxu0
        %v650 = vmul.f32 %v645, 0.5
        %v651 = vrcp.pop 1.4142135
        %v652 = vmul.f32 %v645, %v651
        %v653 = vand.u32 2147483647, %v652
        %v654 = vmul.f32 %v653, 0.3275911
        %v655 = vadd.f32 %v654, 1.0
        %v656 = vrcp.pop %v655
        %v657 = vmul.f32 1.0, %v656
        %v658 = vmul.f32 %v657, 1.0614054
        %v659 = vadd.f32 %v658, -1.4531521
        %v660 = vmul.f32 %v657, %v659
        %v661 = vadd.f32 %v660, 1.4214138
        %v662 = vmul.f32 %v657, %v661
        %v663 = vadd.f32 %v662, -0.28449672
        %v664 = vmul.f32 %v657, %v663
        %v665 = vadd.f32 %v664, 0.2548296
        %v666 = vmul.f32 %v657, %v665
        %v667 = vsub.f32 0.0, %v653
        %v668 = vmul.f32 %v667, %v653
        %v669 = vmul.f32 %v668, 1.442695
        %v670 = vpow.pop %v669
        %v671 = vmul.f32 %v666, %v670
        %v672 = vsub.f32 1.0, %v671
        %vm673 = vcmp.ge.f32.partialorder %v652, 0.0
        %v674 = vsub.f32 0.0, %v672
        %v675 = vsel %vm673, %v672, %v674
        %v676 = vadd.f32 %v675, 1.0
        %v677 = vmul.f32 %v650, %v676
        %v678 = vpack.c.bf16 %v677, %v677
        %v679 = vld [vmem:[%s2] sm:$0xf]
        %v680 = vld [vmem:[%s2 + $0x4] sm:$0xf]
        %v681 = vld [vmem:[%s2 + $0x8] sm:$0xf]
        %v682 = vld [vmem:[%s2 + $0xc] sm:$0xf]
        %v683 = vld [vmem:[%s2 + $0x10] sm:$0xf]
        %v684 = vld [vmem:[%s2 + $0x14] sm:$0xf]
        %v685 = vld [vmem:[%s2 + $0x18] sm:$0xf]
        %v686 = vld [vmem:[%s2 + $0x1c] sm:$0xf]
        %v687 = vld [vmem:[%s2 + $0x20] sm:$0xf]
        %v688 = vld [vmem:[%s2 + $0x24] sm:$0xf]
        %v689 = vld [vmem:[%s2 + $0x28] sm:$0xf]
        %v690 = vld [vmem:[%s2 + $0x2c] sm:$0xf]
        %v691 = vld [vmem:[%s2 + $0x30] sm:$0xf]
        %v692 = vld [vmem:[%s2 + $0x34] sm:$0xf]
        %v693 = vld [vmem:[%s2 + $0x38] sm:$0xf]
        %v694 = vld [vmem:[%s2 + $0x3c] sm:$0xf]
        %v695 = vlaneseq
        %v696 = vshrl.u32 %v695, 7
        %v697 = vsub.s32 5, %v696
        %v698 = vrot.slane %v226, %v697
        %v715 = vunpack.c.l.b16 %v679
        %v716 = vunpack.c.l.b16 %v680
        %v717 = vunpack.c.l.b16 %v681
        %v718 = vunpack.c.l.b16 %v682
        %v719 = vunpack.c.l.b16 %v683
        %v720 = vunpack.c.l.b16 %v684
        %v721 = vunpack.c.l.b16 %v685
        %v722 = vunpack.c.l.b16 %v686
        %v723 = vunpack.c.l.b16 %v687
        %v724 = vunpack.c.l.b16 %v688
        %v725 = vunpack.c.l.b16 %v689
        %v726 = vunpack.c.l.b16 %v690
        %v727 = vunpack.c.l.b16 %v691
        %v728 = vunpack.c.l.b16 %v692
        %v729 = vunpack.c.l.b16 %v693
        %v730 = vunpack.c.l.b16 %v694
        %v731 = vpack.c.b16 %v716, %v715
        %v732 = vpack.c.b16 %v718, %v717
        %v733 = vpack.c.b16 %v720, %v719
        %v734 = vpack.c.b16 %v722, %v721
        %v735 = vpack.c.b16 %v724, %v723
        %v736 = vpack.c.b16 %v726, %v725
        %v737 = vpack.c.b16 %v728, %v727
        %v738 = vpack.c.b16 %v730, %v729
        %747 = vmatprep.subr.bf16.mxu0 0
        %748 = vmatpush1.bf16.msra.mxu0 %v731
        %749 = vmatprep.subr.bf16.mxu0 0
        %750 = vmatpush1.bf16.msra.mxu0 %v732
        %751 = vmatprep.subr.bf16.mxu0 0
        %752 = vmatpush1.bf16.msra.mxu0 %v733
        %753 = vmatprep.subr.bf16.mxu0 0
        %754 = vmatpush1.bf16.msra.mxu0 %v734
        %755 = vmatprep.subr.bf16.mxu0 0
        %756 = vmatpush1.bf16.msra.mxu0 %v735
        %757 = vmatprep.subr.bf16.mxu0 0
        %758 = vmatpush1.bf16.msra.mxu0 %v736
        %759 = vmatprep.subr.bf16.mxu0 0
        %760 = vmatpush1.bf16.msra.mxu0 %v737
        %761 = vmatprep.subr.bf16.mxu0 0
        %762 = vmatpush1.bf16.msra.mxu0 %v738
        %763 = vmatprep.subr.bf16.mxu0 0
        %764 = vmatpush1.bf16.msra.mxu0 0
        %765 = vmatprep.subr.bf16.mxu0 0
        %766 = vmatpush1.bf16.msra.mxu0 0
        %767 = vmatprep.subr.bf16.mxu0 0
        %768 = vmatpush1.bf16.msra.mxu0 0
        %769 = vmatprep.subr.bf16.mxu0 0
        %770 = vmatpush1.bf16.msra.mxu0 0
        %771 = vmatprep.subr.bf16.mxu0 0
        %772 = vmatpush1.bf16.msra.mxu0 0
        %773 = vmatprep.subr.bf16.mxu0 0
        %774 = vmatpush1.bf16.msra.mxu0 0
        %775 = vmatprep.subr.bf16.mxu0 0
        %776 = vmatpush1.bf16.msra.mxu0 0
        %777 = vmatprep.subr.bf16.mxu0 0
        %778 = vmatpush1.bf16.msra.mxu0 0
        %779 = vmatprep.mubr.bf16.mxu0 0
        %780 = vmatmul.mubr.bf16.gmra.mrb[0].mxu0 %v678
        %v781 = vpop.f32.mrb[0].mxu0
        %v782 = vadd.f32 %v698, %v781
        %v783 = vpop.f32.mrb[0].mxu0
        %v784 = vpop.f32.mrb[0].mxu0
        %v785 = vpop.f32.mrb[0].mxu0
        %786 = vdwg.mxu0
        %v787 = vadd.f32 %v570, %v782
        %788 = vst.msk [vmem:[%s215] sm:$0xff] %vm227, %v787
        %s789 = sand.u32 %s137, 1
        %s790 = scalar_lea.sflag [#allocation3], %s789
        %s791 = sand.u32 %s137, 1
        %s792 = smul.addr %s791, 8
        %s793 = scalar_lea.vmem [#allocation2], %s792
        // Predicated region
        $region41: #{vit_block_pallas.1} parent=39 // pred_check
          %p794 = pneg %p147
        $region42: #{vit_block_pallas.1} parent=39 // pred_check_branch
          %796 = sbr.rel (%p794) target = $region44
        $region43: #{vit_block_pallas.1} parent=39 // pred_region
          %s798 = ssub.s32 128, 128
          %799 = vsyncadd %s790, %s798
          %s800 = smul.addr %s19, 128
          %s801 = scalar_lea.hbm %s5, %s800
          %s803 = sshll.u32 %s793, 4
          %s804 = int_to_ptr.vmem [resolvable:$true] %s803
          %806 = dma.vmem_to_hbm [thread:$0]  %s804, 128, %s801, %s790
        $region44: #{vit_block_pallas.1} parent=39 // pred_fallthru
          _
      $region40: #{vit_block_pallas.1} parent=5 // pred_fallthru
        _
      %p807 = scmp.le.s32.totalorder 2, %s14
      // Predicated region
      $region45: #{vit_block_pallas.1} parent=5 // pred_check
        %p808 = pneg %p807
      $region46: #{vit_block_pallas.1} parent=5 // pred_check_branch
        %810 = sbr.rel (%p808) target = $region48
      $region47: #{vit_block_pallas.1} parent=5 // pred_region
        %s811 = ssub.s32 %s14, 2
        // Predicated region
        $region49: #{vit_block_pallas.1} parent=47 // pred_check
          %p812 = pneg %p153
        $region50: #{vit_block_pallas.1} parent=47 // pred_check_branch
          %814 = sbr.rel (%p812) target = $region52
        $region51: #{vit_block_pallas.1} parent=47 // pred_region
          %s815 = sand.u32 %s138, 1
          %s816 = scalar_lea.sflag [#allocation3], %s815
          %s817 = sand.u32 %s138, 1
          %s818 = smul.addr %s817, 8
          %s819 = scalar_lea.vmem [#allocation2], %s818
          %820 = dma.done %s816, 128
        $region52: #{vit_block_pallas.1} parent=47 // pred_fallthru
          _
      $region48: #{vit_block_pallas.1} parent=5 // pred_fallthru
        _
    $region6: #{vit_block_pallas.1} parent=1 // loop_footer
      %s18 = sadd.s32 1, %s14
    $region7: #{vit_block_pallas.1} parent=1 // loop_footer_branch
      %13 = sbr.rel target = $region3
    $region8: #{vit_block_pallas.1} parent=1 // loop_exit
      _
    %821 = vsyncpa [#allocation3], 1
    %s822 = scalar_lea.sflag [#allocation3], 1
    %823 = vsyncpa %s822, 1

</llo_original>
